<compile_context>
chip_gen: v6e
topology: v6e:2x2x1
jax: 0.10.0
libtpu: 0.0.40
codegen_flags: <defaults>
</compile_context>

<pallas_src>
import math
import functools

import jax
import jax.numpy as jnp
from jax.experimental import pallas as pl
from jax.experimental.pallas import tpu as pltpu

_VMEM_LIMIT = 64 * 1024 * 1024  # explicit scoped-VMEM budget (safe on v5e/v6e/v7x)


def _pick_tile(dim, target, align):
    """Largest t <= target with dim % t == 0 and t % align == 0; else full dim."""
    if dim <= target:
        return dim
    for t in range(target, 0, -1):
        if dim % t == 0 and t % align == 0:
            return t
    return dim


# ----------------------------------------------------------------------------
# Kernel 1: tiled dense linear layer  y = x @ W + b
#   x: (M, Din), W: (Din, Dout) (PyTorch weight already transposed), b: (Dout,)
#   grid = (M/tm, Dout/tn, Din/tk); f32 accumulator lives in VMEM scratch.
# ----------------------------------------------------------------------------
def _linear_kernel(x_ref, w_ref, b_ref, o_ref, acc_ref):
    k = pl.program_id(2)

    @pl.when(k == 0)
    def _():
        acc_ref[...] = jnp.zeros_like(acc_ref)

    acc_ref[...] += jnp.dot(x_ref[...], w_ref[...],
                            preferred_element_type=jnp.float32)

    @pl.when(k == pl.num_programs(2) - 1)
    def _():
        o_ref[...] = (acc_ref[...] + b_ref[...]).astype(o_ref.dtype)


def linear(x2d, w, b, *, tm=256, tn=512, tk=512):
    M, Din = x2d.shape
    Dout = w.shape[1]
    tm = _pick_tile(M, tm, 8)        # sublane-aligned row tile
    tn = _pick_tile(Dout, tn, 128)   # lane-aligned output tile (MXU friendly)
    tk = _pick_tile(Din, tk, 128)    # lane-aligned reduction tile
    grid = (M // tm, Dout // tn, Din // tk)
    return pl.pallas_call(
        _linear_kernel,
        out_shape=jax.ShapeDtypeStruct((M, Dout), x2d.dtype),
        grid=grid,
        in_specs=[
            pl.BlockSpec((tm, tk), lambda i, j, k: (i, k)),
            pl.BlockSpec((tk, tn), lambda i, j, k: (k, j)),
            pl.BlockSpec((1, tn), lambda i, j, k: (0, j)),
        ],
        out_specs=pl.BlockSpec((tm, tn), lambda i, j, k: (i, j)),
        scratch_shapes=[pltpu.VMEM((tm, tn), jnp.float32)],
        compiler_params=pltpu.CompilerParams(
            dimension_semantics=("parallel", "parallel", "arbitrary"),
            vmem_limit_bytes=_VMEM_LIMIT),
    )(x2d, w, b.reshape(1, Dout))


# ----------------------------------------------------------------------------
# Kernel 2: flash-attention-style scaled dot-product attention
#   grid = (B, H, Sq/tq, Skv/tkv); KV axis is the "arbitrary" reduction axis.
#   Online softmax state (running max / sum / f32 accumulator) in VMEM scratch.
#   Blocks are (1, tile, d_k) views of (B, S, D) (head slice along D) so there
#   are no HBM head transposes and the output store is 128-lane dense.
# ----------------------------------------------------------------------------
def _flash_kernel(q_ref, k_ref, v_ref, o_ref, m_ref, l_ref, acc_ref, *, scale):
    kv = pl.program_id(3)

    @pl.when(kv == 0)
    def _():
        m_ref[...] = jnp.full_like(m_ref, -jnp.inf)
        l_ref[...] = jnp.zeros_like(l_ref)
        acc_ref[...] = jnp.zeros_like(acc_ref)

    q = q_ref[0] * scale            # scale the small operand (O(S*d_k), not O(S^2))
    k = k_ref[0]
    v = v_ref[0]

    # Contract last dims directly — no k.T / XLU transpose.
    s = jax.lax.dot_general(q, k, (((1,), (1,)), ((), ())),
                            preferred_element_type=jnp.float32)   # (tq, tkv)

    m_prev = m_ref[...]
    m_new = jnp.maximum(m_prev, jnp.max(s, axis=-1, keepdims=True))
    alpha = jnp.exp(m_prev - m_new)
    p = jnp.exp(s - m_new)
    l_ref[...] = alpha * l_ref[...] + jnp.sum(p, axis=-1, keepdims=True)
    acc_ref[...] = alpha * acc_ref[...] + jnp.dot(
        p.astype(v.dtype), v, preferred_element_type=jnp.float32)
    m_ref[...] = m_new

    @pl.when(kv == pl.num_programs(3) - 1)
    def _():
        inv_l = pl.reciprocal(l_ref[...], approx=True)   # EUP slot — ~free
        o_ref[0] = (acc_ref[...] * inv_l).astype(o_ref.dtype)


def flash_attention(qp, kp, vp, num_heads, *, tq=256, tkv=256):
    # qp/kp/vp: (B, S, D) with D = num_heads * d_k
    B, S, D = qp.shape
    d_k = D // num_heads
    scale = 1.0 / math.sqrt(d_k)
    tq = _pick_tile(S, tq, 8)
    tkv = _pick_tile(S, tkv, 8)

    if d_k % 128 == 0:
        # Lane-aligned head slice directly out of the (B, S, D) activations:
        # no HBM transposes, 128-lane-dense output stores.
        arrs = (qp, kp, vp)
        qmap = lambda b, h, qi, kv: (b, qi, h)
        kvmap = lambda b, h, qi, kv: (b, kv, h)
        omap = lambda b, h, qi, kv: (b, qi, h)
        out_shape = jax.ShapeDtypeStruct((B, S, D), qp.dtype)
        post = lambda o: o
    else:
        # Fallback for d_k not lane-aligned: head-major (B*H, S, d_k) layout.
        def to_heads(x):
            return (x.reshape(B, S, num_heads, d_k)
                     .transpose(0, 2, 1, 3)
                     .reshape(B * num_heads, S, d_k))
        arrs = tuple(to_heads(x) for x in (qp, kp, vp))
        qmap = lambda b, h, qi, kv: (b * num_heads + h, qi, 0)
        kvmap = lambda b, h, qi, kv: (b * num_heads + h, kv, 0)
        omap = qmap
        out_shape = jax.ShapeDtypeStruct((B * num_heads, S, d_k), qp.dtype)
        post = lambda o: (o.reshape(B, num_heads, S, d_k)
                           .transpose(0, 2, 1, 3)
                           .reshape(B, S, D))

    out = pl.pallas_call(
        functools.partial(_flash_kernel, scale=scale),
        out_shape=out_shape,
        grid=(B, num_heads, S // tq, S // tkv),
        in_specs=[
            pl.BlockSpec((1, tq, d_k), qmap),
            pl.BlockSpec((1, tkv, d_k), kvmap),
            pl.BlockSpec((1, tkv, d_k), kvmap),
        ],
        out_specs=pl.BlockSpec((1, tq, d_k), omap),
        scratch_shapes=[
            pltpu.VMEM((tq, 1), jnp.float32),     # running max
            pltpu.VMEM((tq, 1), jnp.float32),     # running sum
            pltpu.VMEM((tq, d_k), jnp.float32),   # f32 accumulator
        ],
        compiler_params=pltpu.CompilerParams(
            dimension_semantics=("parallel", "parallel", "parallel", "arbitrary"),
            vmem_limit_bytes=_VMEM_LIMIT),
    )(*arrs)
    return post(out)


# ----------------------------------------------------------------------------
# Module wrapper
# ----------------------------------------------------------------------------
def init_mha_params(key, d_model):
    # Deterministic init mimicking nn.Linear's U(-1/sqrt(fan_in), 1/sqrt(fan_in)).
    ks = jax.random.split(key, 8)
    lim = 1.0 / math.sqrt(d_model)

    def lin(kw, kb):
        w = jax.random.uniform(kw, (d_model, d_model), jnp.float32, -lim, lim)
        b = jax.random.uniform(kb, (d_model,), jnp.float32, -lim, lim)
        return w, b  # stored as (Din, Dout) — i.e. PyTorch weight transposed

    return {
        "q": lin(ks[0], ks[1]),
        "k": lin(ks[2], ks[3]),
        "v": lin(ks[4], ks[5]),
        "out": lin(ks[6], ks[7]),
    }


def multi_head_attention(params, q, k, v, num_heads, mask=None):
    if mask is not None:
        # TODO(synk): additive/boolean mask support inside the flash kernel.
        raise NotImplementedError("attention mask not supported by the Pallas kernel")

    B, S, D = q.shape
    assert D % num_heads == 0

    if (q is k) and (k is v):
        # Self-attention: fused QKV projection — read x from HBM once,
        # and a wide (3D) N dim keeps the MXU full.
        w_qkv = jnp.concatenate(
            [params["q"][0], params["k"][0], params["v"][0]], axis=1)  # (D, 3D)
        b_qkv = jnp.concatenate(
            [params["q"][1], params["k"][1], params["v"][1]])          # (3D,)
        qkv = linear(q.reshape(B * S, D), w_qkv, b_qkv)                # (B*S, 3D)
        qp = qkv[:, :D].reshape(B, S, D)
        kp = qkv[:, D:2 * D].reshape(B, S, D)
        vp = qkv[:, 2 * D:].reshape(B, S, D)
    else:
        qp = linear(q.reshape(B * S, D), *params["q"]).reshape(B, S, D)
        kp = linear(k.reshape(B * S, D), *params["k"]).reshape(B, S, D)
        vp = linear(v.reshape(B * S, D), *params["v"]).reshape(B, S, D)

    ctx = flash_attention(qp, kp, vp, num_heads)            # (B, S, D)

    w_o, b_o = params["out"]
    return linear(ctx.reshape(B * S, D), w_o, b_o).reshape(B, S, D)


# ----------------------------------------------------------------------------
# Pure-JAX reference for sanity checking
# ----------------------------------------------------------------------------
def mha_ref(params, q, k, v, num_heads):
    B, S, D = q.shape
    d_k = D // num_heads

    def proj(x, wb):
        w, b = wb
        return x @ w + b

    qp = proj(q, params["q"]).reshape(B, S, num_heads, d_k).transpose(0, 2, 1, 3)
    kp = proj(k, params["k"]).reshape(B, S, num_heads, d_k).transpose(0, 2, 1, 3)
    vp = proj(v, params["v"]).reshape(B, S, num_heads, d_k).transpose(0, 2, 1, 3)
    s = jnp.einsum("bhqd,bhkd->bhqk", qp, kp) / math.sqrt(d_k)
    p = jax.nn.softmax(s, axis=-1)
    ctx = jnp.einsum("bhqk,bhkd->bhqd", p, vp)
    ctx = ctx.transpose(0, 2, 1, 3).reshape(B, S, D)
    w_o, b_o = params["out"]
    return ctx @ w_o + b_o


if __name__ == "__main__":
    # d_model / num_heads follow the PyTorch module's config (512, 4 -> d_k=128);
    # small batch and sequence keep the test light.
    B, S, d_model, num_heads = 2, 8, 512, 4

    key = jax.random.PRNGKey(0)
    kparams, kx, kq, kk = jax.random.split(key, 4)
    params = init_mha_params(kparams, d_model)

    # Self-attention (fused-QKV path + flash attention).
    x = jax.random.normal(kx, (B, S, d_model), jnp.float32)
    out_self = jax.block_until_ready(multi_head_attention(params, x, x, x, num_heads))
    ref_self = mha_ref(params, x, x, x, num_heads)
    assert out_self.shape == (B, S, d_model)
    assert jnp.allclose(out_self, ref_self, atol=2e-3, rtol=2e-3), float(
        jnp.max(jnp.abs(out_self - ref_self)))

    # Cross-attention (separate projection path).
    q_in = jax.random.normal(kq, (B, S, d_model), jnp.float32)
    k_in = jax.random.normal(kk, (B, S, d_model), jnp.float32)
    out_cross = jax.block_until_ready(
        multi_head_attention(params, q_in, k_in, x, num_heads))
    ref_cross = mha_ref(params, q_in, k_in, x, num_heads)
    assert jnp.allclose(out_cross, ref_cross, atol=2e-3, rtol=2e-3), float(
        jnp.max(jnp.abs(out_cross - ref_cross)))

    print("KERNEL_OK")
</pallas_src>

<mosaic_0001>
module attributes {stable_mosaic.version = 11 : i64} {
  func.func @_linear_kernel(%arg0: i32, %arg1: i32, %arg2: i32, %arg3: memref<16x512xf32, #tpu.memory_space<vmem>>, %arg4: memref<512x512xf32, #tpu.memory_space<vmem>>, %arg5: memref<1x512xf32, #tpu.memory_space<vmem>>, %arg6: memref<16x512xf32, #tpu.memory_space<vmem>>, %arg7: memref<16x512xf32, #tpu.memory_space<vmem>>) attributes {dimension_semantics = [#tpu.dimension_semantics<parallel>, #tpu.dimension_semantics<parallel>, #tpu.dimension_semantics<arbitrary>], iteration_bounds = array<i64: 1, 3, 1>, scalar_prefetch = 0 : i64, scratch_operands = 1 : i64, tpu.core_type = #tpu.core_type<tc>, window_params = [{transform_indices = @transform_0, window_bounds = array<i64: 16, 512>}, {transform_indices = @transform_1, window_bounds = array<i64: 512, 512>}, {transform_indices = @transform_2, window_bounds = array<i64: 1, 512>}, {transform_indices = @transform_3, window_bounds = array<i64: 16, 512>}]} {
    %c0_i32 = arith.constant 0 : i32
    %0 = arith.cmpi eq, %arg2, %c0_i32 : i32
    %1 = arith.extui %0 : i1 to i32
    %c0_i32_0 = arith.constant 0 : i32
    %2 = arith.cmpi ne, %1, %c0_i32_0 : i32
    scf.if %2 {
      %cst_10 = arith.constant 0.000000e+00 : f32
      %12 = vector.broadcast %cst_10 : f32 to vector<16x512xf32>
      %c0_11 = arith.constant 0 : index
      %c0_12 = arith.constant 0 : index
      %13 = vector.load %arg7[%c0_11, %c0_12] : memref<16x512xf32, #tpu.memory_space<vmem>>, vector<16x512xf32>
      tpu.vector_store %arg7[%c0_11, %c0_12], %12 {strides = array<i32>} : memref<16x512xf32, #tpu.memory_space<vmem>>, vector<16x512xf32>,
    } else {
    }
    %c0 = arith.constant 0 : index
    %c0_1 = arith.constant 0 : index
    %3 = vector.load %arg7[%c0, %c0_1] : memref<16x512xf32, #tpu.memory_space<vmem>>, vector<16x512xf32>
    %c0_2 = arith.constant 0 : index
    %c0_3 = arith.constant 0 : index
    %4 = vector.load %arg3[%c0_2, %c0_3] : memref<16x512xf32, #tpu.memory_space<vmem>>, vector<16x512xf32>
    %c0_4 = arith.constant 0 : index
    %c0_5 = arith.constant 0 : index
    %5 = vector.load %arg4[%c0_4, %c0_5] : memref<512x512xf32, #tpu.memory_space<vmem>>, vector<512x512xf32>
    %cst = arith.constant dense<0.000000e+00> : vector<16x512xf32>
    %6 = tpu.matmul %4, %5, %cst {dimension_numbers = #tpu.dot_dimension_numbers<[1], [0], [0], [1], [0, 0, 1, 1], [], []>} : vector<16x512xf32>, vector<512x512xf32>, vector<16x512xf32> -> vector<16x512xf32>
    %7 = arith.addf %3, %6 : vector<16x512xf32>
    %c0_6 = arith.constant 0 : index
    %c0_7 = arith.constant 0 : index
    %8 = vector.load %arg7[%c0_6, %c0_7] : memref<16x512xf32, #tpu.memory_space<vmem>>, vector<16x512xf32>
    tpu.vector_store %arg7[%c0_6, %c0_7], %7 {strides = array<i32>} : memref<16x512xf32, #tpu.memory_space<vmem>>, vector<16x512xf32>,
    %c0_i32_8 = arith.constant 0 : i32
    %9 = arith.cmpi eq, %arg2, %c0_i32_8 : i32
    %10 = arith.extui %9 : i1 to i32
    %c0_i32_9 = arith.constant 0 : i32
    %11 = arith.cmpi ne, %10, %c0_i32_9 : i32
    scf.if %11 {
      %c0_10 = arith.constant 0 : index
      %c0_11 = arith.constant 0 : index
      %12 = vector.load %arg7[%c0_10, %c0_11] : memref<16x512xf32, #tpu.memory_space<vmem>>, vector<16x512xf32>
      %c0_12 = arith.constant 0 : index
      %c0_13 = arith.constant 0 : index
      %13 = vector.load %arg5[%c0_12, %c0_13] : memref<1x512xf32, #tpu.memory_space<vmem>>, vector<1x512xf32>
      %14 = vector.broadcast %13 : vector<1x512xf32> to vector<16x512xf32>
      %15 = arith.addf %12, %14 : vector<16x512xf32>
      %c0_14 = arith.constant 0 : index
      %c0_15 = arith.constant 0 : index
      %16 = vector.load %arg6[%c0_14, %c0_15] : memref<16x512xf32, #tpu.memory_space<vmem>>, vector<16x512xf32>
      tpu.vector_store %arg6[%c0_14, %c0_15], %15 {strides = array<i32>} : memref<16x512xf32, #tpu.memory_space<vmem>>, vector<16x512xf32>,
    } else {
    }
    return
  }
  func.func @transform_0(%arg0: i32, %arg1: i32, %arg2: i32) -> (i32, i32) {
    %c0_i32 = arith.constant 0 : i32
    return %arg0, %arg2 : i32, i32
  }
  func.func @transform_1(%arg0: i32, %arg1: i32, %arg2: i32) -> (i32, i32) {
    %c0_i32 = arith.constant 0 : i32
    return %arg2, %arg1 : i32, i32
  }
  func.func @transform_2(%arg0: i32, %arg1: i32, %arg2: i32) -> (i32, i32) {
    %c0_i32 = arith.constant 0 : i32
    %c0_i32_0 = arith.constant 0 : i32
    return %c0_i32, %arg1 : i32, i32
  }
  func.func @transform_3(%arg0: i32, %arg1: i32, %arg2: i32) -> (i32, i32) {
    %c0_i32 = arith.constant 0 : i32
    return %arg0, %arg1 : i32, i32
  }
}

</mosaic_0001>

<llo_original>
// kernel: tpu_custom_call.1
$region0: #{tpu_custom_call.1}
  #allocation0 [shape = 'u32[]', space=smem, size = 0x4, offset = 0x4, fixed_abs, tag = 'smem constant byte address 0x4 - core index']
  #allocation1 [shape = 'u32[144,128]{1,0:T(1,128)}', space=vmem, size = 0x12000, scoped, tag = 'internal scratch']
  #allocation2 [shape = 'f32[16,512]{1,0:T(8,128)}', space=vmem, size = 0x8000, scoped, tag = 'scratch operand']
  %s0 = inlined_call_operand.hbm [shape: f32[16,512], index: 0, kind: input, shape index: {}]
  %s1 = inlined_call_operand.hbm [shape: f32[512,1536], index: 1, kind: input, shape index: {}]
  %s2 = inlined_call_operand.hbm [shape: f32[1,1536], index: 2, kind: input, shape index: {}]
  %s3 = inlined_call_operand.hbm [shape: f32[16,1536], index: 3, kind: output, shape index: {}]
  %s4 = sld [smem:[#allocation0]]
  $region65: #{tpu_custom_call.1} parent=0
    _
  %s6 = ssub.s32 1, %s4
  %s7 = scalar_select 0, %s6, %s4
  $region1: #{tpu_custom_call.1} parent=0
    #allocation3 [shape = 'u8[32768]{0}', space=vmem, size = 0x8000, scoped, tag = 'input window, operand 0, single buffered']
    #allocation4 [shape = 's32[2]{0}', space=sflag, size = 0x8, scoped, tag = 'scoped memory for tpu_custom_call.1']
    #allocation5 [shape = 's32[2]{0}', space=sflag, size = 0x8, scoped, tag = 'scoped memory for tpu_custom_call.1']
    #allocation6 [shape = 'u8[2097152]{0}', space=vmem, size = 0x200000, scoped, tag = 'input window, operand 1']
    #allocation7 [shape = 's32[2]{0}', space=sflag, size = 0x8, scoped, tag = 'scoped memory for tpu_custom_call.1']
    #allocation8 [shape = 'u8[4096]{0}', space=vmem, size = 0x1000, scoped, tag = 'input window, operand 2']
    #allocation9 [shape = 'u8[65536]{0}', space=vmem, size = 0x10000, scoped, tag = 'output window, operand 0']
    %8 = vsyncpa [#allocation4], 0
    %9 = vsyncpa [#allocation7], 0
    %s10 = scalar_lea.sflag [#allocation7], 1
    %11 = vsyncpa %s10, 0
    %12 = vsyncpa [#allocation5], 0
    %s13 = scalar_lea.sflag [#allocation5], 1
    %14 = vsyncpa %s13, 0
    loop: start=0, step=1, limit=5
    $region2: #{tpu_custom_call.1} parent=1 // loop_pre_header
      _
    $region3: #{tpu_custom_call.1} parent=1 // loop_header
      %s16 = sphi 0, %s20
      %p17 = scmp.ge.s32.totalorder %s16, 5
      %s23 = sphi 0, %s42
      %s24 = sphi 0, %s38
      %s25 = sphi 0, %s34
      %s26 = sphi 0, %s23
      %s27 = sphi 0, %s24
      %s28 = sphi 0, %s25
      %s29 = sphi 0, %s26
      %s30 = sphi 0, %s27
      %s31 = sphi 0, %s28
      %s47 = sphi 0, %s49
      %s50 = sphi 0, %s47
      %s51 = sphi 0, %s50
      %s67 = sphi 0, %s51
      %s75 = sphi 0, %s77
      %s78 = sphi 0, %s75
      %s79 = sphi 0, %s78
      %s95 = sphi 0, %s79
      %s101 = sphi 0, %s103
      %s104 = sphi 0, %s101
      %s105 = sphi 0, %s104
      %s121 = sphi 0, %s105
      %s129 = sphi 0, %s131
      %s132 = sphi 0, %s129
      %s133 = sphi 0, %s132
      %s149 = sphi 0, %s133
    $region4: #{tpu_custom_call.1} parent=1 // loop_header_branch
      %19 = sbr.rel (%p17) target = $region8
    $region5: #{tpu_custom_call.1} parent=1 // loop_body
      %s21 = ssub.s32 %s16, 1
      %s22 = ssub.s32 %s16, 2
      %s32 = sadd.s32 1, %s25
      %p33 = scmp.ge.s32.totalorder %s32, 1
      %s34 = scalar_select %p33, 0, %s32
      %s35 = sadd.s32 1, %s24
      %s36 = scalar_select %p33, %s35, %s24
      %p37 = scmp.ge.s32.totalorder %s36, 3
      %s38 = scalar_select %p37, 0, %s36
      %s39 = sadd.s32 1, %s23
      %s40 = scalar_select %p37, %s39, %s23
      %p41 = scmp.ge.s32.totalorder %s40, 1
      %s42 = scalar_select %p41, 0, %s40
      %s43 = ssub.s32 %s23, %s42
      %s44 = ssub.s32 %s25, %s34
      %s45 = sor.u32 %s43, %s44
      %p46 = scmp.eq.s32.totalorder %s45, 0
      %s48 = sadd.s32 %s47, 1
      %s49 = scalar_select %p46, %s47, %s48
      %p52 = pneg %p46
      %p53 = scmp.eq.s32.totalorder %s16, 2
      %p54 = por %p52, %p53
      %p55 = scmp.ne.s32.totalorder %s47, %s50
      %p56 = scmp.eq.s32.totalorder %s16, 0
      %p57 = por %p55, %p56
      %p58 = scmp.ne.s32.totalorder %s47, %s50
      %p59 = scmp.eq.s32.totalorder %s21, 2
      %p60 = por %p58, %p59
      %p61 = scmp.ne.s32.totalorder %s50, %s51
      %p62 = scmp.eq.s32.totalorder %s21, 0
      %p63 = por %p61, %p62
      %p64 = scmp.ne.s32.totalorder %s50, %s51
      %p65 = scmp.eq.s32.totalorder %s22, 2
      %p66 = por %p64, %p65
      %p68 = scmp.ne.s32.totalorder %s51, %s67
      %p69 = scmp.eq.s32.totalorder %s22, 0
      %p70 = por %p68, %p69
      %s71 = ssub.s32 %s25, %s34
      %s72 = ssub.s32 %s24, %s38
      %s73 = sor.u32 %s71, %s72
      %p74 = scmp.eq.s32.totalorder %s73, 0
      %s76 = sadd.s32 %s75, 1
      %s77 = scalar_select %p74, %s75, %s76
      %p80 = pneg %p74
      %p81 = scmp.eq.s32.totalorder %s16, 2
      %p82 = por %p80, %p81
      %p83 = scmp.ne.s32.totalorder %s75, %s78
      %p84 = scmp.eq.s32.totalorder %s16, 0
      %p85 = por %p83, %p84
      %p86 = scmp.ne.s32.totalorder %s75, %s78
      %p87 = scmp.eq.s32.totalorder %s21, 2
      %p88 = por %p86, %p87
      %p89 = scmp.ne.s32.totalorder %s78, %s79
      %p90 = scmp.eq.s32.totalorder %s21, 0
      %p91 = por %p89, %p90
      %p92 = scmp.ne.s32.totalorder %s78, %s79
      %p93 = scmp.eq.s32.totalorder %s22, 2
      %p94 = por %p92, %p93
      %p96 = scmp.ne.s32.totalorder %s79, %s95
      %p97 = scmp.eq.s32.totalorder %s22, 0
      %p98 = por %p96, %p97
      %s99 = ssub.s32 %s24, %s38
      %p100 = scmp.eq.s32.totalorder %s99, 0
      %s102 = sadd.s32 %s101, 1
      %s103 = scalar_select %p100, %s101, %s102
      %p106 = pneg %p100
      %p107 = scmp.eq.s32.totalorder %s16, 2
      %p108 = por %p106, %p107
      %p109 = scmp.ne.s32.totalorder %s101, %s104
      %p110 = scmp.eq.s32.totalorder %s16, 0
      %p111 = por %p109, %p110
      %p112 = scmp.ne.s32.totalorder %s101, %s104
      %p113 = scmp.eq.s32.totalorder %s21, 2
      %p114 = por %p112, %p113
      %p115 = scmp.ne.s32.totalorder %s104, %s105
      %p116 = scmp.eq.s32.totalorder %s21, 0
      %p117 = por %p115, %p116
      %p118 = scmp.ne.s32.totalorder %s104, %s105
      %p119 = scmp.eq.s32.totalorder %s22, 2
      %p120 = por %p118, %p119
      %p122 = scmp.ne.s32.totalorder %s105, %s121
      %p123 = scmp.eq.s32.totalorder %s22, 0
      %p124 = por %p122, %p123
      %s125 = ssub.s32 %s23, %s42
      %s126 = ssub.s32 %s24, %s38
      %s127 = sor.u32 %s125, %s126
      %p128 = scmp.eq.s32.totalorder %s127, 0
      %s130 = sadd.s32 %s129, 1
      %s131 = scalar_select %p128, %s129, %s130
      %p134 = pneg %p128
      %p135 = scmp.eq.s32.totalorder %s16, 2
      %p136 = por %p134, %p135
      %p137 = scmp.ne.s32.totalorder %s129, %s132
      %p138 = scmp.eq.s32.totalorder %s16, 0
      %p139 = por %p137, %p138
      %p140 = scmp.ne.s32.totalorder %s129, %s132
      %p141 = scmp.eq.s32.totalorder %s21, 2
      %p142 = por %p140, %p141
      %p143 = scmp.ne.s32.totalorder %s132, %s133
      %p144 = scmp.eq.s32.totalorder %s21, 0
      %p145 = por %p143, %p144
      %p146 = scmp.ne.s32.totalorder %s132, %s133
      %p147 = scmp.eq.s32.totalorder %s22, 2
      %p148 = por %p146, %p147
      %p150 = scmp.ne.s32.totalorder %s133, %s149
      %p151 = scmp.eq.s32.totalorder %s22, 0
      %p152 = por %p150, %p151
      %p153 = scmp.le.s32.totalorder 1, %s16
      %p154 = scmp.lt.s32.totalorder %s16, 4
      %p155 = pnand %p153, %p154
      %p156 = pneg %p155
      // Predicated region
      $region9: #{tpu_custom_call.1} parent=5 // pred_check
        _
      $region10: #{tpu_custom_call.1} parent=5 // pred_check_branch
        %158 = sbr.rel (%p155) target = $region12
      $region11: #{tpu_custom_call.1} parent=5 // pred_region
        %s159 = ssub.s32 %s16, 1
        // Predicated region
        $region13: #{tpu_custom_call.1} parent=11 // pred_check
          %p160 = pneg %p63
        $region14: #{tpu_custom_call.1} parent=11 // pred_check_branch
          %162 = sbr.rel (%p160) target = $region16
        $region15: #{tpu_custom_call.1} parent=11 // pred_region
          %s163 = smul.u32 2, %s26
          %s164 = smul.u32 4, %s28
          %s166 = ssub.s32 1024, 1024
          %167 = vsyncadd [#allocation4], %s166
          %s168 = smul.addr %s163, 4
          %s169 = sadd.s32 %s164, %s168
          %s170 = smul.addr %s169, 128
          %s171 = scalar_lea.hbm %s0, %s170
          %s172 = sshll.u32 [#allocation3], 4
          %s173 = int_to_ptr.vmem [resolvable:$true] %s172
          %178 = dma.hbm_to_vmem [thread:$0]  %s171, 1024, %s173, [#allocation4], 512, 512, 32
        $region16: #{tpu_custom_call.1} parent=11 // pred_fallthru
          _
      $region12: #{tpu_custom_call.1} parent=5 // pred_fallthru
        _
      %p179 = scmp.lt.s32.totalorder %s16, 3
      // Predicated region
      $region17: #{tpu_custom_call.1} parent=5 // pred_check
        %p180 = pneg %p179
      $region18: #{tpu_custom_call.1} parent=5 // pred_check_branch
        %182 = sbr.rel (%p180) target = $region20
      $region19: #{tpu_custom_call.1} parent=5 // pred_region
        // Predicated region
        $region21: #{tpu_custom_call.1} parent=19 // pred_check
          %p183 = pneg %p85
        $region22: #{tpu_custom_call.1} parent=19 // pred_check_branch
          %185 = sbr.rel (%p183) target = $region24
        $region23: #{tpu_custom_call.1} parent=19 // pred_region
          %s186 = sand.u32 %s16, 1
          %s187 = scalar_lea.sflag [#allocation7], %s186
          %s188 = sand.u32 %s75, 1
          %s189 = smul.addr %s188, 2048
          %s190 = scalar_lea.vmem [#allocation6], %s189
          %s191 = smul.u32 64, %s25
          %s192 = smul.u32 4, %s24
          %s194 = ssub.s32 32768, 32768
          %195 = vsyncadd %s187, %s194
          %s196 = smul.addr %s191, 12
          %s197 = sadd.s32 %s192, %s196
          %s198 = smul.addr %s197, 128
          %s199 = scalar_lea.hbm %s1, %s198
          %s200 = sshll.u32 %s190, 4
          %s201 = int_to_ptr.vmem [resolvable:$true] %s200
          %206 = dma.hbm_to_vmem [thread:$0]  %s199, 32768, %s201, %s187, 1536, 512, 32
        $region24: #{tpu_custom_call.1} parent=19 // pred_fallthru
          _
        // Predicated region
        $region25: #{tpu_custom_call.1} parent=19 // pred_check
          %p207 = pneg %p111
        $region26: #{tpu_custom_call.1} parent=19 // pred_check_branch
          %209 = sbr.rel (%p207) target = $region28
        $region27: #{tpu_custom_call.1} parent=19 // pred_region
          %s210 = sand.u32 %s16, 1
          %s211 = scalar_lea.sflag [#allocation7], %s210
          %s212 = sand.u32 %s101, 1
          %s213 = smul.addr %s212, 4
          %s214 = scalar_lea.vmem [#allocation8], %s213
          %s215 = smul.u32 4, %s24
          %s217 = ssub.s32 64, 64
          %218 = vsyncadd %s211, %s217
          %s219 = smul.addr %s215, 16
          %s220 = scalar_lea.hbm %s2, %s219
          %s222 = sshll.u32 %s214, 4
          %s223 = int_to_ptr.vmem [resolvable:$true] %s222
          %225 = dma.hbm_to_vmem [thread:$0]  %s220, 64, %s223, %s211
        $region28: #{tpu_custom_call.1} parent=19 // pred_fallthru
          _
      $region20: #{tpu_custom_call.1} parent=5 // pred_fallthru
        _
      %p226 = scmp.le.s32.totalorder 1, %s16
      %p227 = scmp.lt.s32.totalorder %s16, 4
      %p228 = pnand %p226, %p227
      %p229 = pneg %p228
      // Predicated region
      $region29: #{tpu_custom_call.1} parent=5 // pred_check
        _
      $region30: #{tpu_custom_call.1} parent=5 // pred_check_branch
        %231 = sbr.rel (%p228) target = $region32
      $region31: #{tpu_custom_call.1} parent=5 // pred_region
        %s232 = ssub.s32 %s16, 1
        // Predicated region
        $region33: #{tpu_custom_call.1} parent=31 // pred_check
          %p233 = pneg %p63
        $region34: #{tpu_custom_call.1} parent=31 // pred_check_branch
          %235 = sbr.rel (%p233) target = $region36
        $region35: #{tpu_custom_call.1} parent=31 // pred_region
          %236 = dma.done [#allocation4], 1024
        $region36: #{tpu_custom_call.1} parent=31 // pred_fallthru
          _
        %s237 = sand.u32 %s21, 1
        %s238 = scalar_lea.sflag [#allocation7], %s237
        %s239 = sand.u32 %s78, 1
        %s240 = smul.addr %s239, 2048
        %s241 = scalar_lea.vmem [#allocation6], %s240
        // Predicated region
        $region37: #{tpu_custom_call.1} parent=31 // pred_check
          %p242 = pneg %p91
        $region38: #{tpu_custom_call.1} parent=31 // pred_check_branch
          %244 = sbr.rel (%p242) target = $region40
        $region39: #{tpu_custom_call.1} parent=31 // pred_region
          %245 = dma.done %s238, 32768
        $region40: #{tpu_custom_call.1} parent=31 // pred_fallthru
          _
        %s246 = sand.u32 %s21, 1
        %s247 = scalar_lea.sflag [#allocation7], %s246
        %s248 = sand.u32 %s104, 1
        %s249 = smul.addr %s248, 4
        %s250 = scalar_lea.vmem [#allocation8], %s249
        // Predicated region
        $region41: #{tpu_custom_call.1} parent=31 // pred_check
          %p251 = pneg %p117
        $region42: #{tpu_custom_call.1} parent=31 // pred_check_branch
          %253 = sbr.rel (%p251) target = $region44
        $region43: #{tpu_custom_call.1} parent=31 // pred_region
          %254 = dma.done %s247, 64
        $region44: #{tpu_custom_call.1} parent=31 // pred_fallthru
          _
        %p255 = pneg %p63
        %p256 = pneg %p60
        %s257 = sand.u32 %s21, 1
        %s258 = scalar_lea.sflag [#allocation7], %s257
        %s259 = sand.u32 %s78, 1
        %s260 = smul.addr %s259, 2048
        %s261 = scalar_lea.vmem [#allocation6], %s260
        %p262 = pneg %p91
        %p263 = pneg %p88
        %s264 = sand.u32 %s21, 1
        %s265 = scalar_lea.sflag [#allocation7], %s264
        %s266 = sand.u32 %s104, 1
        %s267 = smul.addr %s266, 4
        %s268 = scalar_lea.vmem [#allocation8], %s267
        %p269 = pneg %p117
        %p270 = pneg %p114
        %p271 = pneg %p145
        %p272 = pneg %p142
        %s273 = sand.u32 %s132, 1
        %s274 = scalar_lea.sflag [#allocation5], %s273
        %s275 = sand.u32 %s132, 1
        %s276 = smul.addr %s275, 64
        %s277 = scalar_lea.vmem [#allocation9], %s276
        %s278 = smul.u32 2, %s26
        %s279 = smul.u32 4, %s28
        %s280 = smul.u32 64, %s28
        %s281 = smul.u32 4, %s27
        %s282 = smul.u32 4, %s27
        %s283 = smul.u32 2, %s26
        %s284 = smul.u32 4, %s27
        %p285 = scmp.eq.s32.totalorder %s28, 0
        // Predicated region
        $region45: #{tpu_custom_call.1} parent=31 // pred_check
          %p286 = pneg %p285
        $region46: #{tpu_custom_call.1} parent=31 // pred_check_branch
          %288 = sbr.rel (%p286) target = $region48
        $region47: #{tpu_custom_call.1} parent=31 // pred_region
          %289 = vst [vmem:[#allocation2] sm:$0xff] 0.0
          %290 = vst [vmem:[#allocation2 + $0x8] sm:$0xff] 0.0
          %291 = vst [vmem:[#allocation2 + $0x10] sm:$0xff] 0.0
          %292 = vst [vmem:[#allocation2 + $0x18] sm:$0xff] 0.0
          %293 = vst [vmem:[#allocation2 + $0x20] sm:$0xff] 0.0
          %294 = vst [vmem:[#allocation2 + $0x28] sm:$0xff] 0.0
          %295 = vst [vmem:[#allocation2 + $0x30] sm:$0xff] 0.0
          %296 = vst [vmem:[#allocation2 + $0x38] sm:$0xff] 0.0
        $region48: #{tpu_custom_call.1} parent=31 // pred_fallthru
          _
        %v297 = vld [vmem:[#allocation2] sm:$0xff]
        %v298 = vld [vmem:[#allocation2 + $0x8] sm:$0xff]
        %v299 = vld [vmem:[#allocation2 + $0x10] sm:$0xff]
        %v300 = vld [vmem:[#allocation2 + $0x18] sm:$0xff]
        %v301 = vld [vmem:[#allocation2 + $0x20] sm:$0xff]
        %v302 = vld [vmem:[#allocation2 + $0x28] sm:$0xff]
        %v303 = vld [vmem:[#allocation2 + $0x30] sm:$0xff]
        %v304 = vld [vmem:[#allocation2 + $0x38] sm:$0xff]
        %v305 = vld [vmem:[#allocation3] sm:$0xff]
        %v306 = vld [vmem:[#allocation3 + $0x8] sm:$0xff]
        %v307 = vld [vmem:[#allocation3 + $0x10] sm:$0xff]
        %v308 = vld [vmem:[#allocation3 + $0x18] sm:$0xff]
        %v309 = vld [vmem:[#allocation3 + $0x20] sm:$0xff]
        %v310 = vld [vmem:[#allocation3 + $0x28] sm:$0xff]
        %v311 = vld [vmem:[#allocation3 + $0x30] sm:$0xff]
        %v312 = vld [vmem:[#allocation3 + $0x38] sm:$0xff]
        %v313 = vld [vmem:[%s241] sm:$0xff]
        %v314 = vld [vmem:[%s241 + $0x8] sm:$0xff]
        %v315 = vld [vmem:[%s241 + $0x10] sm:$0xff]
        %v316 = vld [vmem:[%s241 + $0x18] sm:$0xff]
        %v317 = vld [vmem:[%s241 + $0x20] sm:$0xff]
        %v318 = vld [vmem:[%s241 + $0x28] sm:$0xff]
        %v319 = vld [vmem:[%s241 + $0x30] sm:$0xff]
        %v320 = vld [vmem:[%s241 + $0x38] sm:$0xff]
        %v321 = vld [vmem:[%s241 + $0x40] sm:$0xff]
        %v322 = vld [vmem:[%s241 + $0x48] sm:$0xff]
        %v323 = vld [vmem:[%s241 + $0x50] sm:$0xff]
        %v324 = vld [vmem:[%s241 + $0x58] sm:$0xff]
        %v325 = vld [vmem:[%s241 + $0x60] sm:$0xff]
        %v326 = vld [vmem:[%s241 + $0x68] sm:$0xff]
        %v327 = vld [vmem:[%s241 + $0x70] sm:$0xff]
        %v328 = vld [vmem:[%s241 + $0x78] sm:$0xff]
        %v329 = vld [vmem:[%s241 + $0x80] sm:$0xff]
        %v330 = vld [vmem:[%s241 + $0x88] sm:$0xff]
        %v331 = vld [vmem:[%s241 + $0x90] sm:$0xff]
        %v332 = vld [vmem:[%s241 + $0x98] sm:$0xff]
        %v333 = vld [vmem:[%s241 + $0xa0] sm:$0xff]
        %v334 = vld [vmem:[%s241 + $0xa8] sm:$0xff]
        %v335 = vld [vmem:[%s241 + $0xb0] sm:$0xff]
        %v336 = vld [vmem:[%s241 + $0xb8] sm:$0xff]
        %v337 = vld [vmem:[%s241 + $0xc0] sm:$0xff]
        %v338 = vld [vmem:[%s241 + $0xc8] sm:$0xff]
        %v339 = vld [vmem:[%s241 + $0xd0] sm:$0xff]
        %v340 = vld [vmem:[%s241 + $0xd8] sm:$0xff]
        %v341 = vld [vmem:[%s241 + $0xe0] sm:$0xff]
        %v342 = vld [vmem:[%s241 + $0xe8] sm:$0xff]
        %v343 = vld [vmem:[%s241 + $0xf0] sm:$0xff]
        %v344 = vld [vmem:[%s241 + $0xf8] sm:$0xff]
        %v345 = vld [vmem:[%s241 + $0x100] sm:$0xff]
        %v346 = vld [vmem:[%s241 + $0x108] sm:$0xff]
        %v347 = vld [vmem:[%s241 + $0x110] sm:$0xff]
        %v348 = vld [vmem:[%s241 + $0x118] sm:$0xff]
        %v349 = vld [vmem:[%s241 + $0x120] sm:$0xff]
        %v350 = vld [vmem:[%s241 + $0x128] sm:$0xff]
        %v351 = vld [vmem:[%s241 + $0x130] sm:$0xff]
        %v352 = vld [vmem:[%s241 + $0x138] sm:$0xff]
        %v353 = vld [vmem:[%s241 + $0x140] sm:$0xff]
        %v354 = vld [vmem:[%s241 + $0x148] sm:$0xff]
        %v355 = vld [vmem:[%s241 + $0x150] sm:$0xff]
        %v356 = vld [vmem:[%s241 + $0x158] sm:$0xff]
        %v357 = vld [vmem:[%s241 + $0x160] sm:$0xff]
        %v358 = vld [vmem:[%s241 + $0x168] sm:$0xff]
        %v359 = vld [vmem:[%s241 + $0x170] sm:$0xff]
        %v360 = vld [vmem:[%s241 + $0x178] sm:$0xff]
        %v361 = vld [vmem:[%s241 + $0x180] sm:$0xff]
        %v362 = vld [vmem:[%s241 + $0x188] sm:$0xff]
        %v363 = vld [vmem:[%s241 + $0x190] sm:$0xff]
        %v364 = vld [vmem:[%s241 + $0x198] sm:$0xff]
        %v365 = vld [vmem:[%s241 + $0x1a0] sm:$0xff]
        %v366 = vld [vmem:[%s241 + $0x1a8] sm:$0xff]
        %v367 = vld [vmem:[%s241 + $0x1b0] sm:$0xff]
        %v368 = vld [vmem:[%s241 + $0x1b8] sm:$0xff]
        %v369 = vld [vmem:[%s241 + $0x1c0] sm:$0xff]
        %v370 = vld [vmem:[%s241 + $0x1c8] sm:$0xff]
        %v371 = vld [vmem:[%s241 + $0x1d0] sm:$0xff]
        %v372 = vld [vmem:[%s241 + $0x1d8] sm:$0xff]
        %v373 = vld [vmem:[%s241 + $0x1e0] sm:$0xff]
        %v374 = vld [vmem:[%s241 + $0x1e8] sm:$0xff]
        %v375 = vld [vmem:[%s241 + $0x1f0] sm:$0xff]
        %v376 = vld [vmem:[%s241 + $0x1f8] sm:$0xff]
        %v377 = vld [vmem:[%s241 + $0x200] sm:$0xff]
        %v378 = vld [vmem:[%s241 + $0x208] sm:$0xff]
        %v379 = vld [vmem:[%s241 + $0x210] sm:$0xff]
        %v380 = vld [vmem:[%s241 + $0x218] sm:$0xff]
        %v381 = vld [vmem:[%s241 + $0x220] sm:$0xff]
        %v382 = vld [vmem:[%s241 + $0x228] sm:$0xff]
        %v383 = vld [vmem:[%s241 + $0x230] sm:$0xff]
        %v384 = vld [vmem:[%s241 + $0x238] sm:$0xff]
        %v385 = vld [vmem:[%s241 + $0x240] sm:$0xff]
        %v386 = vld [vmem:[%s241 + $0x248] sm:$0xff]
        %v387 = vld [vmem:[%s241 + $0x250] sm:$0xff]
        %v388 = vld [vmem:[%s241 + $0x258] sm:$0xff]
        %v389 = vld [vmem:[%s241 + $0x260] sm:$0xff]
        %v390 = vld [vmem:[%s241 + $0x268] sm:$0xff]
        %v391 = vld [vmem:[%s241 + $0x270] sm:$0xff]
        %v392 = vld [vmem:[%s241 + $0x278] sm:$0xff]
        %v393 = vld [vmem:[%s241 + $0x280] sm:$0xff]
        %v394 = vld [vmem:[%s241 + $0x288] sm:$0xff]
        %v395 = vld [vmem:[%s241 + $0x290] sm:$0xff]
        %v396 = vld [vmem:[%s241 + $0x298] sm:$0xff]
        %v397 = vld [vmem:[%s241 + $0x2a0] sm:$0xff]
        %v398 = vld [vmem:[%s241 + $0x2a8] sm:$0xff]
        %v399 = vld [vmem:[%s241 + $0x2b0] sm:$0xff]
        %v400 = vld [vmem:[%s241 + $0x2b8] sm:$0xff]
        %v401 = vld [vmem:[%s241 + $0x2c0] sm:$0xff]
        %v402 = vld [vmem:[%s241 + $0x2c8] sm:$0xff]
        %v403 = vld [vmem:[%s241 + $0x2d0] sm:$0xff]
        %v404 = vld [vmem:[%s241 + $0x2d8] sm:$0xff]
        %v405 = vld [vmem:[%s241 + $0x2e0] sm:$0xff]
        %v406 = vld [vmem:[%s241 + $0x2e8] sm:$0xff]
        %v407 = vld [vmem:[%s241 + $0x2f0] sm:$0xff]
        %v408 = vld [vmem:[%s241 + $0x2f8] sm:$0xff]
        %v409 = vld [vmem:[%s241 + $0x300] sm:$0xff]
        %v410 = vld [vmem:[%s241 + $0x308] sm:$0xff]
        %v411 = vld [vmem:[%s241 + $0x310] sm:$0xff]
        %v412 = vld [vmem:[%s241 + $0x318] sm:$0xff]
        %v413 = vld [vmem:[%s241 + $0x320] sm:$0xff]
        %v414 = vld [vmem:[%s241 + $0x328] sm:$0xff]
        %v415 = vld [vmem:[%s241 + $0x330] sm:$0xff]
        %v416 = vld [vmem:[%s241 + $0x338] sm:$0xff]
        %v417 = vld [vmem:[%s241 + $0x340] sm:$0xff]
        %v418 = vld [vmem:[%s241 + $0x348] sm:$0xff]
        %v419 = vld [vmem:[%s241 + $0x350] sm:$0xff]
        %v420 = vld [vmem:[%s241 + $0x358] sm:$0xff]
        %v421 = vld [vmem:[%s241 + $0x360] sm:$0xff]
        %v422 = vld [vmem:[%s241 + $0x368] sm:$0xff]
        %v423 = vld [vmem:[%s241 + $0x370] sm:$0xff]
        %v424 = vld [vmem:[%s241 + $0x378] sm:$0xff]
        %v425 = vld [vmem:[%s241 + $0x380] sm:$0xff]
        %v426 = vld [vmem:[%s241 + $0x388] sm:$0xff]
        %v427 = vld [vmem:[%s241 + $0x390] sm:$0xff]
        %v428 = vld [vmem:[%s241 + $0x398] sm:$0xff]
        %v429 = vld [vmem:[%s241 + $0x3a0] sm:$0xff]
        %v430 = vld [vmem:[%s241 + $0x3a8] sm:$0xff]
        %v431 = vld [vmem:[%s241 + $0x3b0] sm:$0xff]
        %v432 = vld [vmem:[%s241 + $0x3b8] sm:$0xff]
        %v433 = vld [vmem:[%s241 + $0x3c0] sm:$0xff]
        %v434 = vld [vmem:[%s241 + $0x3c8] sm:$0xff]
        %v435 = vld [vmem:[%s241 + $0x3d0] sm:$0xff]
        %v436 = vld [vmem:[%s241 + $0x3d8] sm:$0xff]
        %v437 = vld [vmem:[%s241 + $0x3e0] sm:$0xff]
        %v438 = vld [vmem:[%s241 + $0x3e8] sm:$0xff]
        %v439 = vld [vmem:[%s241 + $0x3f0] sm:$0xff]
        %v440 = vld [vmem:[%s241 + $0x3f8] sm:$0xff]
        %v441 = vld [vmem:[%s241 + $0x400] sm:$0xff]
        %v442 = vld [vmem:[%s241 + $0x408] sm:$0xff]
        %v443 = vld [vmem:[%s241 + $0x410] sm:$0xff]
        %v444 = vld [vmem:[%s241 + $0x418] sm:$0xff]
        %v445 = vld [vmem:[%s241 + $0x420] sm:$0xff]
        %v446 = vld [vmem:[%s241 + $0x428] sm:$0xff]
        %v447 = vld [vmem:[%s241 + $0x430] sm:$0xff]
        %v448 = vld [vmem:[%s241 + $0x438] sm:$0xff]
        %v449 = vld [vmem:[%s241 + $0x440] sm:$0xff]
        %v450 = vld [vmem:[%s241 + $0x448] sm:$0xff]
        %v451 = vld [vmem:[%s241 + $0x450] sm:$0xff]
        %v452 = vld [vmem:[%s241 + $0x458] sm:$0xff]
        %v453 = vld [vmem:[%s241 + $0x460] sm:$0xff]
        %v454 = vld [vmem:[%s241 + $0x468] sm:$0xff]
        %v455 = vld [vmem:[%s241 + $0x470] sm:$0xff]
        %v456 = vld [vmem:[%s241 + $0x478] sm:$0xff]
        %v457 = vld [vmem:[%s241 + $0x480] sm:$0xff]
        %v458 = vld [vmem:[%s241 + $0x488] sm:$0xff]
        %v459 = vld [vmem:[%s241 + $0x490] sm:$0xff]
        %v460 = vld [vmem:[%s241 + $0x498] sm:$0xff]
        %v461 = vld [vmem:[%s241 + $0x4a0] sm:$0xff]
        %v462 = vld [vmem:[%s241 + $0x4a8] sm:$0xff]
        %v463 = vld [vmem:[%s241 + $0x4b0] sm:$0xff]
        %v464 = vld [vmem:[%s241 + $0x4b8] sm:$0xff]
        %v465 = vld [vmem:[%s241 + $0x4c0] sm:$0xff]
        %v466 = vld [vmem:[%s241 + $0x4c8] sm:$0xff]
        %v467 = vld [vmem:[%s241 + $0x4d0] sm:$0xff]
        %v468 = vld [vmem:[%s241 + $0x4d8] sm:$0xff]
        %v469 = vld [vmem:[%s241 + $0x4e0] sm:$0xff]
        %v470 = vld [vmem:[%s241 + $0x4e8] sm:$0xff]
        %v471 = vld [vmem:[%s241 + $0x4f0] sm:$0xff]
        %v472 = vld [vmem:[%s241 + $0x4f8] sm:$0xff]
        %v473 = vld [vmem:[%s241 + $0x500] sm:$0xff]
        %v474 = vld [vmem:[%s241 + $0x508] sm:$0xff]
        %v475 = vld [vmem:[%s241 + $0x510] sm:$0xff]
        %v476 = vld [vmem:[%s241 + $0x518] sm:$0xff]
        %v477 = vld [vmem:[%s241 + $0x520] sm:$0xff]
        %v478 = vld [vmem:[%s241 + $0x528] sm:$0xff]
        %v479 = vld [vmem:[%s241 + $0x530] sm:$0xff]
        %v480 = vld [vmem:[%s241 + $0x538] sm:$0xff]
        %v481 = vld [vmem:[%s241 + $0x540] sm:$0xff]
        %v482 = vld [vmem:[%s241 + $0x548] sm:$0xff]
        %v483 = vld [vmem:[%s241 + $0x550] sm:$0xff]
        %v484 = vld [vmem:[%s241 + $0x558] sm:$0xff]
        %v485 = vld [vmem:[%s241 + $0x560] sm:$0xff]
        %v486 = vld [vmem:[%s241 + $0x568] sm:$0xff]
        %v487 = vld [vmem:[%s241 + $0x570] sm:$0xff]
        %v488 = vld [vmem:[%s241 + $0x578] sm:$0xff]
        %v489 = vld [vmem:[%s241 + $0x580] sm:$0xff]
        %v490 = vld [vmem:[%s241 + $0x588] sm:$0xff]
        %v491 = vld [vmem:[%s241 + $0x590] sm:$0xff]
        %v492 = vld [vmem:[%s241 + $0x598] sm:$0xff]
        %v493 = vld [vmem:[%s241 + $0x5a0] sm:$0xff]
        %v494 = vld [vmem:[%s241 + $0x5a8] sm:$0xff]
        %v495 = vld [vmem:[%s241 + $0x5b0] sm:$0xff]
        %v496 = vld [vmem:[%s241 + $0x5b8] sm:$0xff]
        %v497 = vld [vmem:[%s241 + $0x5c0] sm:$0xff]
        %v498 = vld [vmem:[%s241 + $0x5c8] sm:$0xff]
        %v499 = vld [vmem:[%s241 + $0x5d0] sm:$0xff]
        %v500 = vld [vmem:[%s241 + $0x5d8] sm:$0xff]
        %v501 = vld [vmem:[%s241 + $0x5e0] sm:$0xff]
        %v502 = vld [vmem:[%s241 + $0x5e8] sm:$0xff]
        %v503 = vld [vmem:[%s241 + $0x5f0] sm:$0xff]
        %v504 = vld [vmem:[%s241 + $0x5f8] sm:$0xff]
        %v505 = vld [vmem:[%s241 + $0x600] sm:$0xff]
        %v506 = vld [vmem:[%s241 + $0x608] sm:$0xff]
        %v507 = vld [vmem:[%s241 + $0x610] sm:$0xff]
        %v508 = vld [vmem:[%s241 + $0x618] sm:$0xff]
        %v509 = vld [vmem:[%s241 + $0x620] sm:$0xff]
        %v510 = vld [vmem:[%s241 + $0x628] sm:$0xff]
        %v511 = vld [vmem:[%s241 + $0x630] sm:$0xff]
        %v512 = vld [vmem:[%s241 + $0x638] sm:$0xff]
        %v513 = vld [vmem:[%s241 + $0x640] sm:$0xff]
        %v514 = vld [vmem:[%s241 + $0x648] sm:$0xff]
        %v515 = vld [vmem:[%s241 + $0x650] sm:$0xff]
        %v516 = vld [vmem:[%s241 + $0x658] sm:$0xff]
        %v517 = vld [vmem:[%s241 + $0x660] sm:$0xff]
        %v518 = vld [vmem:[%s241 + $0x668] sm:$0xff]
        %v519 = vld [vmem:[%s241 + $0x670] sm:$0xff]
        %v520 = vld [vmem:[%s241 + $0x678] sm:$0xff]
        %v521 = vld [vmem:[%s241 + $0x680] sm:$0xff]
        %v522 = vld [vmem:[%s241 + $0x688] sm:$0xff]
        %v523 = vld [vmem:[%s241 + $0x690] sm:$0xff]
        %v524 = vld [vmem:[%s241 + $0x698] sm:$0xff]
        %v525 = vld [vmem:[%s241 + $0x6a0] sm:$0xff]
        %v526 = vld [vmem:[%s241 + $0x6a8] sm:$0xff]
        %v527 = vld [vmem:[%s241 + $0x6b0] sm:$0xff]
        %v528 = vld [vmem:[%s241 + $0x6b8] sm:$0xff]
        %v529 = vld [vmem:[%s241 + $0x6c0] sm:$0xff]
        %v530 = vld [vmem:[%s241 + $0x6c8] sm:$0xff]
        %v531 = vld [vmem:[%s241 + $0x6d0] sm:$0xff]
        %v532 = vld [vmem:[%s241 + $0x6d8] sm:$0xff]
        %v533 = vld [vmem:[%s241 + $0x6e0] sm:$0xff]
        %v534 = vld [vmem:[%s241 + $0x6e8] sm:$0xff]
        %v535 = vld [vmem:[%s241 + $0x6f0] sm:$0xff]
        %v536 = vld [vmem:[%s241 + $0x6f8] sm:$0xff]
        %v537 = vld [vmem:[%s241 + $0x700] sm:$0xff]
        %v538 = vld [vmem:[%s241 + $0x708] sm:$0xff]
        %v539 = vld [vmem:[%s241 + $0x710] sm:$0xff]
        %v540 = vld [vmem:[%s241 + $0x718] sm:$0xff]
        %v541 = vld [vmem:[%s241 + $0x720] sm:$0xff]
        %v542 = vld [vmem:[%s241 + $0x728] sm:$0xff]
        %v543 = vld [vmem:[%s241 + $0x730] sm:$0xff]
        %v544 = vld [vmem:[%s241 + $0x738] sm:$0xff]
        %v545 = vld [vmem:[%s241 + $0x740] sm:$0xff]
        %v546 = vld [vmem:[%s241 + $0x748] sm:$0xff]
        %v547 = vld [vmem:[%s241 + $0x750] sm:$0xff]
        %v548 = vld [vmem:[%s241 + $0x758] sm:$0xff]
        %v549 = vld [vmem:[%s241 + $0x760] sm:$0xff]
        %v550 = vld [vmem:[%s241 + $0x768] sm:$0xff]
        %v551 = vld [vmem:[%s241 + $0x770] sm:$0xff]
        %v552 = vld [vmem:[%s241 + $0x778] sm:$0xff]
        %v553 = vld [vmem:[%s241 + $0x780] sm:$0xff]
        %v554 = vld [vmem:[%s241 + $0x788] sm:$0xff]
        %v555 = vld [vmem:[%s241 + $0x790] sm:$0xff]
        %v556 = vld [vmem:[%s241 + $0x798] sm:$0xff]
        %v557 = vld [vmem:[%s241 + $0x7a0] sm:$0xff]
        %v558 = vld [vmem:[%s241 + $0x7a8] sm:$0xff]
        %v559 = vld [vmem:[%s241 + $0x7b0] sm:$0xff]
        %v560 = vld [vmem:[%s241 + $0x7b8] sm:$0xff]
        %v561 = vld [vmem:[%s241 + $0x7c0] sm:$0xff]
        %v562 = vld [vmem:[%s241 + $0x7c8] sm:$0xff]
        %v563 = vld [vmem:[%s241 + $0x7d0] sm:$0xff]
        %v564 = vld [vmem:[%s241 + $0x7d8] sm:$0xff]
        %v565 = vld [vmem:[%s241 + $0x7e0] sm:$0xff]
        %v566 = vld [vmem:[%s241 + $0x7e8] sm:$0xff]
        %v567 = vld [vmem:[%s241 + $0x7f0] sm:$0xff]
        %v568 = vld [vmem:[%s241 + $0x7f8] sm:$0xff]
        %569 = vmatprep.subr.mxu0 %v374
        %570 = vmatpush1.msra.mxu0 %v373
        %571 = vmatprep.subr.mxu0 %v370
        %572 = vmatpush1.msra.mxu0 %v369
        %573 = vmatprep.subr.mxu0 %v366
        %574 = vmatpush1.msra.mxu0 %v365
        %575 = vmatprep.subr.mxu0 %v362
        %576 = vmatpush1.msra.mxu0 %v361
        %577 = vmatprep.subr.mxu0 %v358
        %578 = vmatpush1.msra.mxu0 %v357
        %579 = vmatprep.subr.mxu0 %v354
        %580 = vmatpush1.msra.mxu0 %v353
        %581 = vmatprep.subr.mxu0 %v350
        %582 = vmatpush1.msra.mxu0 %v349
        %583 = vmatprep.subr.mxu0 %v346
        %584 = vmatpush1.msra.mxu0 %v345
        %585 = vmatprep.subr.mxu0 %v342
        %586 = vmatpush1.msra.mxu0 %v341
        %587 = vmatprep.subr.mxu0 %v338
        %588 = vmatpush1.msra.mxu0 %v337
        %589 = vmatprep.subr.mxu0 %v334
        %590 = vmatpush1.msra.mxu0 %v333
        %591 = vmatprep.subr.mxu0 %v330
        %592 = vmatpush1.msra.mxu0 %v329
        %593 = vmatprep.subr.mxu0 %v326
        %594 = vmatpush1.msra.mxu0 %v325
        %595 = vmatprep.subr.mxu0 %v322
        %596 = vmatpush1.msra.mxu0 %v321
        %597 = vmatprep.subr.mxu0 %v318
        %598 = vmatpush1.msra.mxu0 %v317
        %599 = vmatprep.subr.mxu0 %v314
        %600 = vmatpush1.msra.mxu0 %v313
        %601 = vmatprep.subr.mxu0 %v438
        %602 = vmatpush2.msra.mxu0 %v437
        %603 = vmatprep.subr.mxu0 %v434
        %604 = vmatpush2.msra.mxu0 %v433
        %605 = vmatprep.subr.mxu0 %v430
        %606 = vmatpush2.msra.mxu0 %v429
        %607 = vmatprep.subr.mxu0 %v426
        %608 = vmatpush2.msra.mxu0 %v425
        %609 = vmatprep.subr.mxu0 %v422
        %610 = vmatpush2.msra.mxu0 %v421
        %611 = vmatprep.subr.mxu0 %v418
        %612 = vmatpush2.msra.mxu0 %v417
        %613 = vmatprep.subr.mxu0 %v414
        %614 = vmatpush2.msra.mxu0 %v413
        %615 = vmatprep.subr.mxu0 %v410
        %616 = vmatpush2.msra.mxu0 %v409
        %617 = vmatprep.subr.mxu0 %v406
        %618 = vmatpush2.msra.mxu0 %v405
        %619 = vmatprep.subr.mxu0 %v402
        %620 = vmatpush2.msra.mxu0 %v401
        %621 = vmatprep.subr.mxu0 %v398
        %622 = vmatpush2.msra.mxu0 %v397
        %623 = vmatprep.subr.mxu0 %v394
        %624 = vmatpush2.msra.mxu0 %v393
        %625 = vmatprep.subr.mxu0 %v390
        %626 = vmatpush2.msra.mxu0 %v389
        %627 = vmatprep.subr.mxu0 %v386
        %628 = vmatpush2.msra.mxu0 %v385
        %629 = vmatprep.subr.mxu0 %v382
        %630 = vmatpush2.msra.mxu0 %v381
        %631 = vmatprep.subr.mxu0 %v378
        %632 = vmatpush2.msra.mxu0 %v377
        %633 = vmatprep.mubr.f32.mxu0 %v306
        %634 = vmatmul.mubr.f32.gmra.mxu0 %v305
        %v635 = vpop.f32.mrf.mxu0
        %v636 = vadd.f32 0.0, %v635
        %v637 = vpop.f32.mrf.mxu0
        %v638 = vadd.f32 0.0, %v637
        %639 = vmatprep.mubr.f32.mxu0 %v310
        %640 = vmatmul.mubr.f32.gmra.mxu0 %v309
        %v641 = vpop.f32.mrf.mxu0
        %v642 = vadd.f32 0.0, %v641
        %v643 = vpop.f32.mrf.mxu0
        %v644 = vadd.f32 0.0, %v643
        %645 = vdwg.mxu0
        %646 = vmatprep.subr.mxu0 %v502
        %647 = vmatpush1.msra.mxu0 %v501
        %648 = vmatprep.subr.mxu0 %v498
        %649 = vmatpush1.msra.mxu0 %v497
        %650 = vmatprep.subr.mxu0 %v494
        %651 = vmatpush1.msra.mxu0 %v493
        %652 = vmatprep.subr.mxu0 %v490
        %653 = vmatpush1.msra.mxu0 %v489
        %654 = vmatprep.subr.mxu0 %v486
        %655 = vmatpush1.msra.mxu0 %v485
        %656 = vmatprep.subr.mxu0 %v482
        %657 = vmatpush1.msra.mxu0 %v481
        %658 = vmatprep.subr.mxu0 %v478
        %659 = vmatpush1.msra.mxu0 %v477
        %660 = vmatprep.subr.mxu0 %v474
        %661 = vmatpush1.msra.mxu0 %v473
        %662 = vmatprep.subr.mxu0 %v470
        %663 = vmatpush1.msra.mxu0 %v469
        %664 = vmatprep.subr.mxu0 %v466
        %665 = vmatpush1.msra.mxu0 %v465
        %666 = vmatprep.subr.mxu0 %v462
        %667 = vmatpush1.msra.mxu0 %v461
        %668 = vmatprep.subr.mxu0 %v458
        %669 = vmatpush1.msra.mxu0 %v457
        %670 = vmatprep.subr.mxu0 %v454
        %671 = vmatpush1.msra.mxu0 %v453
        %672 = vmatprep.subr.mxu0 %v450
        %673 = vmatpush1.msra.mxu0 %v449
        %674 = vmatprep.subr.mxu0 %v446
        %675 = vmatpush1.msra.mxu0 %v445
        %676 = vmatprep.subr.mxu0 %v442
        %677 = vmatpush1.msra.mxu0 %v441
        %678 = vmatprep.subr.mxu0 %v566
        %679 = vmatpush2.msra.mxu0 %v565
        %680 = vmatprep.subr.mxu0 %v562
        %681 = vmatpush2.msra.mxu0 %v561
        %682 = vmatprep.subr.mxu0 %v558
        %683 = vmatpush2.msra.mxu0 %v557
        %684 = vmatprep.subr.mxu0 %v554
        %685 = vmatpush2.msra.mxu0 %v553
        %686 = vmatprep.subr.mxu0 %v550
        %687 = vmatpush2.msra.mxu0 %v549
        %688 = vmatprep.subr.mxu0 %v546
        %689 = vmatpush2.msra.mxu0 %v545
        %690 = vmatprep.subr.mxu0 %v542
        %691 = vmatpush2.msra.mxu0 %v541
        %692 = vmatprep.subr.mxu0 %v538
        %693 = vmatpush2.msra.mxu0 %v537
        %694 = vmatprep.subr.mxu0 %v534
        %695 = vmatpush2.msra.mxu0 %v533
        %696 = vmatprep.subr.mxu0 %v530
        %697 = vmatpush2.msra.mxu0 %v529
        %698 = vmatprep.subr.mxu0 %v526
        %699 = vmatpush2.msra.mxu0 %v525
        %700 = vmatprep.subr.mxu0 %v522
        %701 = vmatpush2.msra.mxu0 %v521
        %702 = vmatprep.subr.mxu0 %v518
        %703 = vmatpush2.msra.mxu0 %v517
        %704 = vmatprep.subr.mxu0 %v514
        %705 = vmatpush2.msra.mxu0 %v513
        %706 = vmatprep.subr.mxu0 %v510
        %707 = vmatpush2.msra.mxu0 %v509
        %708 = vmatprep.subr.mxu0 %v506
        %709 = vmatpush2.msra.mxu0 %v505
        %710 = vmatprep.mubr.f32.mxu0 %v308
        %711 = vmatmul.mubr.f32.gmra.mxu0 %v307
        %v712 = vpop.f32.mrf.mxu0
        %v713 = vadd.f32 %v636, %v712
        %v714 = vpop.f32.mrf.mxu0
        %v715 = vadd.f32 %v638, %v714
        %716 = vmatprep.mubr.f32.mxu0 %v312
        %717 = vmatmul.mubr.f32.gmra.mxu0 %v311
        %v718 = vpop.f32.mrf.mxu0
        %v719 = vadd.f32 %v642, %v718
        %v720 = vpop.f32.mrf.mxu0
        %v721 = vadd.f32 %v644, %v720
        %722 = vdwg.mxu0
        %723 = vmatprep.subr.mxu0 %v376
        %724 = vmatpush1.msra.mxu0 %v375
        %725 = vmatprep.subr.mxu0 %v372
        %726 = vmatpush1.msra.mxu0 %v371
        %727 = vmatprep.subr.mxu0 %v368
        %728 = vmatpush1.msra.mxu0 %v367
        %729 = vmatprep.subr.mxu0 %v364
        %730 = vmatpush1.msra.mxu0 %v363
        %731 = vmatprep.subr.mxu0 %v360
        %732 = vmatpush1.msra.mxu0 %v359
        %733 = vmatprep.subr.mxu0 %v356
        %734 = vmatpush1.msra.mxu0 %v355
        %735 = vmatprep.subr.mxu0 %v352
        %736 = vmatpush1.msra.mxu0 %v351
        %737 = vmatprep.subr.mxu0 %v348
        %738 = vmatpush1.msra.mxu0 %v347
        %739 = vmatprep.subr.mxu0 %v344
        %740 = vmatpush1.msra.mxu0 %v343
        %741 = vmatprep.subr.mxu0 %v340
        %742 = vmatpush1.msra.mxu0 %v339
        %743 = vmatprep.subr.mxu0 %v336
        %744 = vmatpush1.msra.mxu0 %v335
        %745 = vmatprep.subr.mxu0 %v332
        %746 = vmatpush1.msra.mxu0 %v331
        %747 = vmatprep.subr.mxu0 %v328
        %748 = vmatpush1.msra.mxu0 %v327
        %749 = vmatprep.subr.mxu0 %v324
        %750 = vmatpush1.msra.mxu0 %v323
        %751 = vmatprep.subr.mxu0 %v320
        %752 = vmatpush1.msra.mxu0 %v319
        %753 = vmatprep.subr.mxu0 %v316
        %754 = vmatpush1.msra.mxu0 %v315
        %755 = vmatprep.subr.mxu0 %v440
        %756 = vmatpush2.msra.mxu0 %v439
        %757 = vmatprep.subr.mxu0 %v436
        %758 = vmatpush2.msra.mxu0 %v435
        %759 = vmatprep.subr.mxu0 %v432
        %760 = vmatpush2.msra.mxu0 %v431
        %761 = vmatprep.subr.mxu0 %v428
        %762 = vmatpush2.msra.mxu0 %v427
        %763 = vmatprep.subr.mxu0 %v424
        %764 = vmatpush2.msra.mxu0 %v423
        %765 = vmatprep.subr.mxu0 %v420
        %766 = vmatpush2.msra.mxu0 %v419
        %767 = vmatprep.subr.mxu0 %v416
        %768 = vmatpush2.msra.mxu0 %v415
        %769 = vmatprep.subr.mxu0 %v412
        %770 = vmatpush2.msra.mxu0 %v411
        %771 = vmatprep.subr.mxu0 %v408
        %772 = vmatpush2.msra.mxu0 %v407
        %773 = vmatprep.subr.mxu0 %v404
        %774 = vmatpush2.msra.mxu0 %v403
        %775 = vmatprep.subr.mxu0 %v400
        %776 = vmatpush2.msra.mxu0 %v399
        %777 = vmatprep.subr.mxu0 %v396
        %778 = vmatpush2.msra.mxu0 %v395
        %779 = vmatprep.subr.mxu0 %v392
        %780 = vmatpush2.msra.mxu0 %v391
        %781 = vmatprep.subr.mxu0 %v388
        %782 = vmatpush2.msra.mxu0 %v387
        %783 = vmatprep.subr.mxu0 %v384
        %784 = vmatpush2.msra.mxu0 %v383
        %785 = vmatprep.subr.mxu0 %v380
        %786 = vmatpush2.msra.mxu0 %v379
        %787 = vmatprep.mubr.f32.mxu0 %v306
        %788 = vmatmul.mubr.f32.gmra.mxu0 %v305
        %v789 = vpop.f32.mrf.mxu0
        %v790 = vadd.f32 0.0, %v789
        %v791 = vpop.f32.mrf.mxu0
        %v792 = vadd.f32 0.0, %v791
        %793 = vmatprep.mubr.f32.mxu0 %v310
        %794 = vmatmul.mubr.f32.gmra.mxu0 %v309
        %v795 = vpop.f32.mrf.mxu0
        %v796 = vadd.f32 0.0, %v795
        %v797 = vpop.f32.mrf.mxu0
        %v798 = vadd.f32 0.0, %v797
        %799 = vdwg.mxu0
        %800 = vmatprep.subr.mxu0 %v504
        %801 = vmatpush1.msra.mxu0 %v503
        %802 = vmatprep.subr.mxu0 %v500
        %803 = vmatpush1.msra.mxu0 %v499
        %804 = vmatprep.subr.mxu0 %v496
        %805 = vmatpush1.msra.mxu0 %v495
        %806 = vmatprep.subr.mxu0 %v492
        %807 = vmatpush1.msra.mxu0 %v491
        %808 = vmatprep.subr.mxu0 %v488
        %809 = vmatpush1.msra.mxu0 %v487
        %810 = vmatprep.subr.mxu0 %v484
        %811 = vmatpush1.msra.mxu0 %v483
        %812 = vmatprep.subr.mxu0 %v480
        %813 = vmatpush1.msra.mxu0 %v479
        %814 = vmatprep.subr.mxu0 %v476
        %815 = vmatpush1.msra.mxu0 %v475
        %816 = vmatprep.subr.mxu0 %v472
        %817 = vmatpush1.msra.mxu0 %v471
        %818 = vmatprep.subr.mxu0 %v468
        %819 = vmatpush1.msra.mxu0 %v467
        %820 = vmatprep.subr.mxu0 %v464
        %821 = vmatpush1.msra.mxu0 %v463
        %822 = vmatprep.subr.mxu0 %v460
        %823 = vmatpush1.msra.mxu0 %v459
        %824 = vmatprep.subr.mxu0 %v456
        %825 = vmatpush1.msra.mxu0 %v455
        %826 = vmatprep.subr.mxu0 %v452
        %827 = vmatpush1.msra.mxu0 %v451
        %828 = vmatprep.subr.mxu0 %v448
        %829 = vmatpush1.msra.mxu0 %v447
        %830 = vmatprep.subr.mxu0 %v444
        %831 = vmatpush1.msra.mxu0 %v443
        %832 = vmatprep.subr.mxu0 %v568
        %833 = vmatpush2.msra.mxu0 %v567
        %834 = vmatprep.subr.mxu0 %v564
        %835 = vmatpush2.msra.mxu0 %v563
        %836 = vmatprep.subr.mxu0 %v560
        %837 = vmatpush2.msra.mxu0 %v559
        %838 = vmatprep.subr.mxu0 %v556
        %839 = vmatpush2.msra.mxu0 %v555
        %840 = vmatprep.subr.mxu0 %v552
        %841 = vmatpush2.msra.mxu0 %v551
        %842 = vmatprep.subr.mxu0 %v548
        %843 = vmatpush2.msra.mxu0 %v547
        %844 = vmatprep.subr.mxu0 %v544
        %845 = vmatpush2.msra.mxu0 %v543
        %846 = vmatprep.subr.mxu0 %v540
        %847 = vmatpush2.msra.mxu0 %v539
        %848 = vmatprep.subr.mxu0 %v536
        %849 = vmatpush2.msra.mxu0 %v535
        %850 = vmatprep.subr.mxu0 %v532
        %851 = vmatpush2.msra.mxu0 %v531
        %852 = vmatprep.subr.mxu0 %v528
        %853 = vmatpush2.msra.mxu0 %v527
        %854 = vmatprep.subr.mxu0 %v524
        %855 = vmatpush2.msra.mxu0 %v523
        %856 = vmatprep.subr.mxu0 %v520
        %857 = vmatpush2.msra.mxu0 %v519
        %858 = vmatprep.subr.mxu0 %v516
        %859 = vmatpush2.msra.mxu0 %v515
        %860 = vmatprep.subr.mxu0 %v512
        %861 = vmatpush2.msra.mxu0 %v511
        %862 = vmatprep.subr.mxu0 %v508
        %863 = vmatpush2.msra.mxu0 %v507
        %864 = vmatprep.mubr.f32.mxu0 %v308
        %865 = vmatmul.mubr.f32.gmra.mxu0 %v307
        %v866 = vpop.f32.mrf.mxu0
        %v867 = vadd.f32 %v790, %v866
        %v868 = vpop.f32.mrf.mxu0
        %v869 = vadd.f32 %v792, %v868
        %870 = vmatprep.mubr.f32.mxu0 %v312
        %871 = vmatmul.mubr.f32.gmra.mxu0 %v311
        %v872 = vpop.f32.mrf.mxu0
        %v873 = vadd.f32 %v796, %v872
        %v874 = vpop.f32.mrf.mxu0
        %v875 = vadd.f32 %v798, %v874
        %876 = vdwg.mxu0
        %v877 = vadd.f32 %v297, %v713
        %v878 = vadd.f32 %v298, %v715
        %v879 = vadd.f32 %v299, %v867
        %v880 = vadd.f32 %v300, %v869
        %v881 = vadd.f32 %v301, %v719
        %v882 = vadd.f32 %v302, %v721
        %v883 = vadd.f32 %v303, %v873
        %v884 = vadd.f32 %v304, %v875
        %885 = vst [vmem:[#allocation2] sm:$0xff] %v877
        %886 = vst [vmem:[#allocation2 + $0x8] sm:$0xff] %v878
        %887 = vst [vmem:[#allocation2 + $0x10] sm:$0xff] %v879
        %888 = vst [vmem:[#allocation2 + $0x18] sm:$0xff] %v880
        %889 = vst [vmem:[#allocation2 + $0x20] sm:$0xff] %v881
        %890 = vst [vmem:[#allocation2 + $0x28] sm:$0xff] %v882
        %891 = vst [vmem:[#allocation2 + $0x30] sm:$0xff] %v883
        %892 = vst [vmem:[#allocation2 + $0x38] sm:$0xff] %v884
        // Predicated region
        $region49: #{tpu_custom_call.1} parent=31 // pred_check
          %p893 = pneg %p285
        $region50: #{tpu_custom_call.1} parent=31 // pred_check_branch
          %895 = sbr.rel (%p893) target = $region52
        $region51: #{tpu_custom_call.1} parent=31 // pred_region
          %v896 = vld [vmem:[#allocation2] sm:$0xff]
          %v897 = vld [vmem:[#allocation2 + $0x8] sm:$0xff]
          %v898 = vld [vmem:[#allocation2 + $0x10] sm:$0xff]
          %v899 = vld [vmem:[#allocation2 + $0x18] sm:$0xff]
          %v900 = vld [vmem:[#allocation2 + $0x20] sm:$0xff]
          %v901 = vld [vmem:[#allocation2 + $0x28] sm:$0xff]
          %v902 = vld [vmem:[#allocation2 + $0x30] sm:$0xff]
          %v903 = vld [vmem:[#allocation2 + $0x38] sm:$0xff]
          %v904 = vld [vmem:[%s250] sm:$0xf]
          %v906 = vlaneseq
          %v907 = vshrl.u32 %v906, 7
          %v908 = vsub.s32 0, %v907
          %v909 = vrot.slane %v904, %v908
          %v910 = vlaneseq
          %v911 = vshrl.u32 %v910, 7
          %v912 = vsub.s32 1, %v911
          %v913 = vrot.slane %v904, %v912
          %v914 = vlaneseq
          %v915 = vshrl.u32 %v914, 7
          %v916 = vsub.s32 2, %v915
          %v917 = vrot.slane %v904, %v916
          %v918 = vlaneseq
          %v919 = vshrl.u32 %v918, 7
          %v920 = vsub.s32 3, %v919
          %v921 = vrot.slane %v904, %v920
          %v926 = vadd.f32 %v896, %v909
          %v927 = vadd.f32 %v897, %v913
          %v928 = vadd.f32 %v898, %v917
          %v929 = vadd.f32 %v899, %v921
          %v930 = vadd.f32 %v900, %v909
          %v931 = vadd.f32 %v901, %v913
          %v932 = vadd.f32 %v902, %v917
          %v933 = vadd.f32 %v903, %v921
          %934 = vst [vmem:[%s277] sm:$0xff] %v926
          %935 = vst [vmem:[%s277 + $0x8] sm:$0xff] %v927
          %936 = vst [vmem:[%s277 + $0x10] sm:$0xff] %v928
          %937 = vst [vmem:[%s277 + $0x18] sm:$0xff] %v929
          %938 = vst [vmem:[%s277 + $0x20] sm:$0xff] %v930
          %939 = vst [vmem:[%s277 + $0x28] sm:$0xff] %v931
          %940 = vst [vmem:[%s277 + $0x30] sm:$0xff] %v932
          %941 = vst [vmem:[%s277 + $0x38] sm:$0xff] %v933
        $region52: #{tpu_custom_call.1} parent=31 // pred_fallthru
          _
        %s942 = sand.u32 %s132, 1
        %s943 = scalar_lea.sflag [#allocation5], %s942
        %s944 = sand.u32 %s132, 1
        %s945 = smul.addr %s944, 64
        %s946 = scalar_lea.vmem [#allocation9], %s945
        // Predicated region
        $region53: #{tpu_custom_call.1} parent=31 // pred_check
          %p947 = pneg %p142
        $region54: #{tpu_custom_call.1} parent=31 // pred_check_branch
          %949 = sbr.rel (%p947) target = $region56
        $region55: #{tpu_custom_call.1} parent=31 // pred_region
          %s950 = smul.u32 2, %s26
          %s951 = smul.u32 4, %s27
          %s953 = ssub.s32 1024, 1024
          %954 = vsyncadd %s943, %s953
          %s955 = smul.addr %s950, 12
          %s956 = sadd.s32 %s951, %s955
          %s957 = smul.addr %s956, 128
          %s958 = scalar_lea.hbm %s3, %s957
          %s959 = sshll.u32 %s946, 4
          %s960 = int_to_ptr.vmem [resolvable:$true] %s959
          %965 = dma.vmem_to_hbm [thread:$0]  %s960, 1024, %s958, %s943, 512, 1536, 32
        $region56: #{tpu_custom_call.1} parent=31 // pred_fallthru
          _
      $region32: #{tpu_custom_call.1} parent=5 // pred_fallthru
        _
      %p966 = scmp.le.s32.totalorder 2, %s16
      // Predicated region
      $region57: #{tpu_custom_call.1} parent=5 // pred_check
        %p967 = pneg %p966
      $region58: #{tpu_custom_call.1} parent=5 // pred_check_branch
        %969 = sbr.rel (%p967) target = $region60
      $region59: #{tpu_custom_call.1} parent=5 // pred_region
        %s970 = ssub.s32 %s16, 2
        // Predicated region
        $region61: #{tpu_custom_call.1} parent=59 // pred_check
          %p971 = pneg %p148
        $region62: #{tpu_custom_call.1} parent=59 // pred_check_branch
          %973 = sbr.rel (%p971) target = $region64
        $region63: #{tpu_custom_call.1} parent=59 // pred_region
          %s974 = sand.u32 %s133, 1
          %s975 = scalar_lea.sflag [#allocation5], %s974
          %s976 = sand.u32 %s133, 1
          %s977 = smul.addr %s976, 64
          %s978 = scalar_lea.vmem [#allocation9], %s977
          %979 = dma.done %s975, 1024
        $region64: #{tpu_custom_call.1} parent=59 // pred_fallthru
          _
      $region60: #{tpu_custom_call.1} parent=5 // pred_fallthru
        _
    $region6: #{tpu_custom_call.1} parent=1 // loop_footer
      %s20 = sadd.s32 1, %s16
    $region7: #{tpu_custom_call.1} parent=1 // loop_footer_branch
      %15 = sbr.rel target = $region3
    $region8: #{tpu_custom_call.1} parent=1 // loop_exit
      _
    %980 = vsyncpa [#allocation4], 1
    %s981 = scalar_lea.sflag [#allocation4], 1
    %982 = vsyncpa %s981, 1
    %983 = vsyncpa [#allocation7], 1
    %s984 = scalar_lea.sflag [#allocation7], 1
    %985 = vsyncpa %s984, 1
    %986 = vsyncpa [#allocation5], 1
    %s987 = scalar_lea.sflag [#allocation5], 1
    %988 = vsyncpa %s987, 1

</llo_original>
